<compile_context>
chip_gen: v7x
topology: tpu7x:2x2x1
jax: 0.10.0
libtpu: 0.0.40
codegen_flags: <defaults>
</compile_context>

<pallas_src>
import jax
import jax.numpy as jnp
from jax.experimental import pallas as pl
from jax.experimental.pallas import tpu as pltpu


def _round_up(x, m):
    return (x + m - 1) // m * m


def _my_sequent_kernel(x_ref, w1_ref, b1_ref, w2_ref, b2_ref, o_ref):
    """One batch tile of Linear -> ReLU -> Linear -> ReLU, fully fused."""
    cdt = w1_ref.dtype                 # MXU operand dtype (bf16 on v6e/v7x)
    # Hoisted single reads; weights/biases are VMEM-resident across the grid.
    x = x_ref[...].astype(cdt)
    b1 = b1_ref[...]                   # (1, hidden)  f32, broadcasts over rows
    b2 = b2_ref[...]                   # (1, out_pad) f32

    # block 0: Linear(in_f -> hidden): bf16 MXU operands, f32 accumulation.
    h = jnp.dot(x, w1_ref[...], preferred_element_type=jnp.float32)
    # block 1: ReLU (bias + relu kept in f32 on the VPU; free vs. store path).
    h = jnp.maximum(h + b1, 0.0)
    # block 2: Linear(hidden -> out_pad): lane-padded weights, f32 accumulate.
    y = jnp.dot(h.astype(cdt), w2_ref[...], preferred_element_type=jnp.float32)
    # block 3: ReLU; lane-dense (multiple-of-128) unmasked store.
    o_ref[...] = jnp.maximum(y + b2, 0.0).astype(o_ref.dtype)


def my_sequent_forward(x, w1, b1, w2, b2, *, block_m=512,
                       compute_dtype=jnp.bfloat16):
    """Fused forward of MySequent(Linear(in->hid), ReLU, Linear(hid->out), ReLU).

    Weights are stored (in_features, out_features), i.e. the transpose of
    PyTorch's nn.Linear.weight, so the kernel computes y = x @ W + b directly.
    """
    n, in_f = x.shape
    hid = w1.shape[1]
    out_f = w2.shape[1]

    # Lane-dense output: pad the second linear's output features up to a
    # multiple of 128 lanes (biggest measured store-path lever); padded
    # columns are relu(0 + 0) = 0 and are sliced off after the call.
    out_pad = _round_up(out_f, 128)
    w2p = jnp.zeros((hid, out_pad), w2.dtype).at[:, :out_f].set(w2)
    b2p = jnp.zeros((1, out_pad), jnp.float32).at[:, :out_f].set(
        b2.reshape(1, out_f).astype(jnp.float32))

    # MXU operands in bf16 (f32 accumulation happens inside the kernel).
    # Biases stay f32: bias-add / ReLU run on the f32 accumulator.
    w1c = w1.astype(compute_dtype)
    w2c = w2p.astype(compute_dtype)
    b1f = b1.reshape(1, hid).astype(jnp.float32)

    # Batch tile: large enough to amortize the ~0.35us/step grid overhead and
    # feed the MXU's M dimension, clamped for tiny batches.  At tm=512 the
    # double-buffered x + out f32 footprint is < 1 MiB, far below the 32 MiB
    # scoped-VMEM default even on v7x, so no explicit vmem_limit_bytes needed.
    tm = min(block_m, _round_up(n, 8))
    grid = (pl.cdiv(n, tm),)

    out = pl.pallas_call(
        _my_sequent_kernel,
        out_shape=jax.ShapeDtypeStruct((n, out_pad), jnp.float32),
        grid=grid,
        in_specs=[
            # x: tiled over batch; BlockSpec double-buffers it so the DMA of
            # tile i+1 overlaps compute of tile i.
            pl.BlockSpec((tm, in_f), lambda i: (i, 0)),
            # Weights / biases: constant block index -> single fetch, stays
            # resident in VMEM for the whole grid.
            pl.BlockSpec((in_f, hid), lambda i: (0, 0)),
            pl.BlockSpec((1, hid), lambda i: (0, 0)),
            pl.BlockSpec((hid, out_pad), lambda i: (0, 0)),
            pl.BlockSpec((1, out_pad), lambda i: (0, 0)),
        ],
        out_specs=pl.BlockSpec((tm, out_pad), lambda i: (i, 0)),
        compiler_params=pltpu.CompilerParams(
            # Batch tiles are independent: shard the grid across both
            # TensorCores on v7x; harmless no-op on v5e/v6e.
            dimension_semantics=("parallel",),
        ),
    )(x, w1c, b1f, w2c, b2p)

    # Drop the lane padding to recover the module's true output width.
    return out[:, :out_f]


def _reference(x, w1, b1, w2, b2, compute_dtype=jnp.float32):
    """Pure-JAX reference mirroring the kernel's dtype path."""
    cdt = compute_dtype
    h = jnp.dot(x.astype(cdt), w1.astype(cdt),
                preferred_element_type=jnp.float32) + b1.reshape(1, -1)
    h = jnp.maximum(h, 0.0)
    y = jnp.dot(h.astype(cdt), w2.astype(cdt),
                preferred_element_type=jnp.float32) + b2.reshape(1, -1)
    return jnp.maximum(y, 0.0)


if __name__ == "__main__":
    key = jax.random.PRNGKey(0)
    k_x, k_w1, k_b1, k_w2, k_b2 = jax.random.split(key, 5)

    # Small feature dims (matching the representative MySequent instantiation);
    # batch is a few tiles wide so the grid / pipelining path is exercised.
    batch, in_f, hidden_f, out_f = 2048, 32, 64, 32

    x = jax.random.normal(k_x, (batch, in_f), dtype=jnp.float32)
    # Parameters stored transposed as (in, out), matching nn.Linear(in_f, hid)
    # and nn.Linear(hid, out_f).
    w1 = jax.random.normal(k_w1, (in_f, hidden_f), dtype=jnp.float32) * 0.1
    b1 = jax.random.normal(k_b1, (hidden_f,), dtype=jnp.float32) * 0.1
    w2 = jax.random.normal(k_w2, (hidden_f, out_f), dtype=jnp.float32) * 0.1
    b2 = jax.random.normal(k_b2, (out_f,), dtype=jnp.float32) * 0.1

    out = my_sequent_forward(x, w1, b1, w2, b2, block_m=512)
    out = jax.block_until_ready(out)
    assert out.shape == (batch, out_f)

    # Tight check against a reference that uses the same bf16 MXU operands
    # and f32 accumulation as the kernel.
    ref_bf16 = _reference(x, w1, b1, w2, b2, compute_dtype=jnp.bfloat16)
    assert jnp.allclose(out, ref_bf16, atol=1e-3, rtol=1e-3), float(
        jnp.max(jnp.abs(out - ref_bf16)))

    # Loose semantic check against the pure-f32 PyTorch-equivalent forward
    # (difference is only bf16 rounding of the matmul operands).
    ref_f32 = _reference(x, w1, b1, w2, b2, compute_dtype=jnp.float32)
    assert jnp.allclose(out, ref_f32, atol=1e-1, rtol=1e-1)

    print("KERNEL_OK")
</pallas_src>

<mosaic_0001>
module attributes {stable_mosaic.version = 11 : i64} {
  func.func @_my_sequent_kernel(%arg0: i32, %arg1: memref<512x32xf32, #tpu.memory_space<vmem>>, %arg2: memref<32x64xbf16, #tpu.memory_space<vmem>>, %arg3: memref<1x64xf32, #tpu.memory_space<vmem>>, %arg4: memref<64x128xbf16, #tpu.memory_space<vmem>>, %arg5: memref<1x128xf32, #tpu.memory_space<vmem>>, %arg6: memref<512x128xf32, #tpu.memory_space<vmem>>) attributes {dimension_semantics = [#tpu.dimension_semantics<parallel>], iteration_bounds = array<i64: 4>, scalar_prefetch = 0 : i64, scratch_operands = 0 : i64, tpu.core_type = #tpu.core_type<tc>, window_params = [{transform_indices = @transform_0, window_bounds = array<i64: 512, 32>}, {pipeline_mode = #tpu.pipeline_mode<synchronous>, transform_indices = @transform_1, window_bounds = array<i64: 32, 64>}, {pipeline_mode = #tpu.pipeline_mode<synchronous>, transform_indices = @transform_2, window_bounds = array<i64: 1, 64>}, {pipeline_mode = #tpu.pipeline_mode<synchronous>, transform_indices = @transform_3, window_bounds = array<i64: 64, 128>}, {pipeline_mode = #tpu.pipeline_mode<synchronous>, transform_indices = @transform_4, window_bounds = array<i64: 1, 128>}, {transform_indices = @transform_5, window_bounds = array<i64: 512, 128>}]} {
    %c0 = arith.constant 0 : index
    %c0_0 = arith.constant 0 : index
    %0 = vector.load %arg1[%c0, %c0_0] : memref<512x32xf32, #tpu.memory_space<vmem>>, vector<512x32xf32>
    %1 = arith.truncf %0 : vector<512x32xf32> to vector<512x32xbf16>
    %c0_1 = arith.constant 0 : index
    %c0_2 = arith.constant 0 : index
    %2 = vector.load %arg3[%c0_1, %c0_2] : memref<1x64xf32, #tpu.memory_space<vmem>>, vector<1x64xf32>
    %c0_3 = arith.constant 0 : index
    %c0_4 = arith.constant 0 : index
    %3 = vector.load %arg5[%c0_3, %c0_4] : memref<1x128xf32, #tpu.memory_space<vmem>>, vector<1x128xf32>
    %c0_5 = arith.constant 0 : index
    %c0_6 = arith.constant 0 : index
    %4 = vector.load %arg2[%c0_5, %c0_6] : memref<32x64xbf16, #tpu.memory_space<vmem>>, vector<32x64xbf16>
    %cst = arith.constant dense<0.000000e+00> : vector<512x64xf32>
    %5 = tpu.matmul %1, %4, %cst {dimension_numbers = #tpu.dot_dimension_numbers<[1], [0], [0], [1], [0, 0, 1, 1], [], []>} : vector<512x32xbf16>, vector<32x64xbf16>, vector<512x64xf32> -> vector<512x64xf32>
    %6 = vector.broadcast %2 : vector<1x64xf32> to vector<512x64xf32>
    %7 = arith.addf %5, %6 : vector<512x64xf32>
    %cst_7 = arith.constant 0.000000e+00 : f32
    %8 = vector.broadcast %cst_7 : f32 to vector<512x64xf32>
    %9 = arith.maximumf %7, %8 : vector<512x64xf32>
    %10 = arith.truncf %9 : vector<512x64xf32> to vector<512x64xbf16>
    %c0_8 = arith.constant 0 : index
    %c0_9 = arith.constant 0 : index
    %11 = vector.load %arg4[%c0_8, %c0_9] : memref<64x128xbf16, #tpu.memory_space<vmem>>, vector<64x128xbf16>
    %cst_10 = arith.constant dense<0.000000e+00> : vector<512x128xf32>
    %12 = tpu.matmul %10, %11, %cst_10 {dimension_numbers = #tpu.dot_dimension_numbers<[1], [0], [0], [1], [0, 0, 1, 1], [], []>} : vector<512x64xbf16>, vector<64x128xbf16>, vector<512x128xf32> -> vector<512x128xf32>
    %13 = vector.broadcast %3 : vector<1x128xf32> to vector<512x128xf32>
    %14 = arith.addf %12, %13 : vector<512x128xf32>
    %cst_11 = arith.constant 0.000000e+00 : f32
    %15 = vector.broadcast %cst_11 : f32 to vector<512x128xf32>
    %16 = arith.maximumf %14, %15 : vector<512x128xf32>
    %c0_12 = arith.constant 0 : index
    %c0_13 = arith.constant 0 : index
    %17 = vector.load %arg6[%c0_12, %c0_13] : memref<512x128xf32, #tpu.memory_space<vmem>>, vector<512x128xf32>
    tpu.vector_store %arg6[%c0_12, %c0_13], %16 {strides = array<i32>} : memref<512x128xf32, #tpu.memory_space<vmem>>, vector<512x128xf32>,
    return
  }
  func.func @transform_0(%arg0: i32) -> (i32, i32) {
    %c0_i32 = arith.constant 0 : i32
    %c0_i32_0 = arith.constant 0 : i32
    return %arg0, %c0_i32 : i32, i32
  }
  func.func @transform_1(%arg0: i32) -> (i32, i32) {
    %c0_i32 = arith.constant 0 : i32
    %c0_i32_0 = arith.constant 0 : i32
    %c0_i32_1 = arith.constant 0 : i32
    return %c0_i32, %c0_i32_0 : i32, i32
  }
  func.func @transform_2(%arg0: i32) -> (i32, i32) {
    %c0_i32 = arith.constant 0 : i32
    %c0_i32_0 = arith.constant 0 : i32
    %c0_i32_1 = arith.constant 0 : i32
    return %c0_i32, %c0_i32_0 : i32, i32
  }
  func.func @transform_3(%arg0: i32) -> (i32, i32) {
    %c0_i32 = arith.constant 0 : i32
    %c0_i32_0 = arith.constant 0 : i32
    %c0_i32_1 = arith.constant 0 : i32
    return %c0_i32, %c0_i32_0 : i32, i32
  }
  func.func @transform_4(%arg0: i32) -> (i32, i32) {
    %c0_i32 = arith.constant 0 : i32
    %c0_i32_0 = arith.constant 0 : i32
    %c0_i32_1 = arith.constant 0 : i32
    return %c0_i32, %c0_i32_0 : i32, i32
  }
  func.func @transform_5(%arg0: i32) -> (i32, i32) {
    %c0_i32 = arith.constant 0 : i32
    %c0_i32_0 = arith.constant 0 : i32
    return %arg0, %c0_i32 : i32, i32
  }
}

</mosaic_0001>

<llo_original>
// kernel: tpu_custom_call.1
$region0: #{tpu_custom_call.1}
  #allocation0 [shape = 'u32[]', space=smem, size = 0x4, offset = 0x4, fixed_abs, tag = 'smem constant byte address 0x4 - core index']
  #allocation1 [shape = 'u32[144,128]{1,0:T(1,128)}', space=vmem, size = 0x12000, scoped, tag = 'internal scratch']
  %s0 = inlined_call_operand.vmem [shape: f32[2048,32], index: 0, kind: input, shape index: {}]
  %s1 = inlined_call_operand.vmem [shape: bf16[32,64], index: 1, kind: input, shape index: {}]
  %s2 = inlined_call_operand.vmem [shape: f32[1,64], index: 2, kind: input, shape index: {}]
  %s3 = inlined_call_operand.vmem [shape: bf16[64,128], index: 3, kind: input, shape index: {}]
  %s4 = inlined_call_operand.vmem [shape: f32[1,128], index: 4, kind: input, shape index: {}]
  %s5 = inlined_call_operand.hbm [shape: f32[2048,128], index: 5, kind: output, shape index: {}]
  %s6 = sld [smem:[#allocation0]]
  $region53: #{tpu_custom_call.1} parent=0
    _
  %s8 = ssub.s32 1, %s6
  %s9 = scalar_select 0, %s8, %s6
  $region1: #{tpu_custom_call.1} parent=0
    #allocation2 [shape = 'u8[524288]{0}', space=vmem, size = 0x80000, scoped, tag = 'output window, operand 0']
    #allocation3 [shape = 's32[2]{0}', space=sflag, size = 0x8, scoped, tag = 'scoped memory for tpu_custom_call.1']
    %10 = vsyncpa [#allocation3], 0
    %s11 = scalar_lea.sflag [#allocation3], 1
    %12 = vsyncpa %s11, 0
    loop: start=0, step=1, limit=6
    $region2: #{tpu_custom_call.1} parent=1 // loop_pre_header
      _
    $region3: #{tpu_custom_call.1} parent=1 // loop_header
      %s14 = sphi 0, %s18
      %p15 = scmp.ge.s32.totalorder %s14, 6
      %s24 = sphi 0, %s26
      %s27 = sphi 0, %s24
      %s28 = sphi 0, %s27
      %s44 = sphi 0, %s28
      %s48 = sphi 0, %s48
      %s50 = sphi 0, %s48
      %s51 = sphi 0, %s50
      %s65 = sphi 0, %s51
      %s69 = sphi 0, %s69
      %s71 = sphi 0, %s69
      %s72 = sphi 0, %s71
      %s86 = sphi 0, %s72
      %s90 = sphi 0, %s90
      %s92 = sphi 0, %s90
      %s93 = sphi 0, %s92
      %s107 = sphi 0, %s93
      %s111 = sphi 0, %s111
      %s113 = sphi 0, %s111
      %s114 = sphi 0, %s113
      %s128 = sphi 0, %s114
      %s134 = sphi 0, %s136
      %s137 = sphi 0, %s134
      %s138 = sphi 0, %s137
      %s154 = sphi 0, %s138
    $region4: #{tpu_custom_call.1} parent=1 // loop_header_branch
      %17 = sbr.rel (%p15) target = $region8
    $region5: #{tpu_custom_call.1} parent=1 // loop_body
      %s19 = ssub.s32 %s14, 1
      %s20 = ssub.s32 %s14, 2
      %s21 = sadd.s32 %s14, 1
      %s22 = ssub.s32 %s14, %s21
      %p23 = scmp.eq.s32.totalorder %s22, 0
      %s25 = sadd.s32 %s24, 1
      %s26 = scalar_select %p23, %s24, %s25
      %p29 = pneg %p23
      %p30 = scmp.eq.s32.totalorder %s14, 3
      %p31 = por %p29, %p30
      %p32 = scmp.ne.s32.totalorder %s24, %s27
      %p33 = scmp.eq.s32.totalorder %s14, 0
      %p34 = por %p32, %p33
      %p35 = scmp.ne.s32.totalorder %s24, %s27
      %p36 = scmp.eq.s32.totalorder %s19, 3
      %p37 = por %p35, %p36
      %p38 = scmp.ne.s32.totalorder %s27, %s28
      %p39 = scmp.eq.s32.totalorder %s19, 0
      %p40 = por %p38, %p39
      %p41 = scmp.ne.s32.totalorder %s27, %s28
      %p42 = scmp.eq.s32.totalorder %s20, 3
      %p43 = por %p41, %p42
      %p45 = scmp.ne.s32.totalorder %s28, %s44
      %p46 = scmp.eq.s32.totalorder %s20, 0
      %p47 = por %p45, %p46
      %s49 = sadd.s32 %s48, 1
      %p52 = scmp.eq.s32.totalorder %s14, 3
      %p53 = scmp.ne.s32.totalorder %s48, %s50
      %p54 = scmp.eq.s32.totalorder %s14, 0
      %p55 = por %p53, %p54
      %p56 = scmp.ne.s32.totalorder %s48, %s50
      %p57 = scmp.eq.s32.totalorder %s19, 3
      %p58 = por %p56, %p57
      %p59 = scmp.ne.s32.totalorder %s50, %s51
      %p60 = scmp.eq.s32.totalorder %s19, 0
      %p61 = por %p59, %p60
      %p62 = scmp.ne.s32.totalorder %s50, %s51
      %p63 = scmp.eq.s32.totalorder %s20, 3
      %p64 = por %p62, %p63
      %p66 = scmp.ne.s32.totalorder %s51, %s65
      %p67 = scmp.eq.s32.totalorder %s20, 0
      %p68 = por %p66, %p67
      %s70 = sadd.s32 %s69, 1
      %p73 = scmp.eq.s32.totalorder %s14, 3
      %p74 = scmp.ne.s32.totalorder %s69, %s71
      %p75 = scmp.eq.s32.totalorder %s14, 0
      %p76 = por %p74, %p75
      %p77 = scmp.ne.s32.totalorder %s69, %s71
      %p78 = scmp.eq.s32.totalorder %s19, 3
      %p79 = por %p77, %p78
      %p80 = scmp.ne.s32.totalorder %s71, %s72
      %p81 = scmp.eq.s32.totalorder %s19, 0
      %p82 = por %p80, %p81
      %p83 = scmp.ne.s32.totalorder %s71, %s72
      %p84 = scmp.eq.s32.totalorder %s20, 3
      %p85 = por %p83, %p84
      %p87 = scmp.ne.s32.totalorder %s72, %s86
      %p88 = scmp.eq.s32.totalorder %s20, 0
      %p89 = por %p87, %p88
      %s91 = sadd.s32 %s90, 1
      %p94 = scmp.eq.s32.totalorder %s14, 3
      %p95 = scmp.ne.s32.totalorder %s90, %s92
      %p96 = scmp.eq.s32.totalorder %s14, 0
      %p97 = por %p95, %p96
      %p98 = scmp.ne.s32.totalorder %s90, %s92
      %p99 = scmp.eq.s32.totalorder %s19, 3
      %p100 = por %p98, %p99
      %p101 = scmp.ne.s32.totalorder %s92, %s93
      %p102 = scmp.eq.s32.totalorder %s19, 0
      %p103 = por %p101, %p102
      %p104 = scmp.ne.s32.totalorder %s92, %s93
      %p105 = scmp.eq.s32.totalorder %s20, 3
      %p106 = por %p104, %p105
      %p108 = scmp.ne.s32.totalorder %s93, %s107
      %p109 = scmp.eq.s32.totalorder %s20, 0
      %p110 = por %p108, %p109
      %s112 = sadd.s32 %s111, 1
      %p115 = scmp.eq.s32.totalorder %s14, 3
      %p116 = scmp.ne.s32.totalorder %s111, %s113
      %p117 = scmp.eq.s32.totalorder %s14, 0
      %p118 = por %p116, %p117
      %p119 = scmp.ne.s32.totalorder %s111, %s113
      %p120 = scmp.eq.s32.totalorder %s19, 3
      %p121 = por %p119, %p120
      %p122 = scmp.ne.s32.totalorder %s113, %s114
      %p123 = scmp.eq.s32.totalorder %s19, 0
      %p124 = por %p122, %p123
      %p125 = scmp.ne.s32.totalorder %s113, %s114
      %p126 = scmp.eq.s32.totalorder %s20, 3
      %p127 = por %p125, %p126
      %p129 = scmp.ne.s32.totalorder %s114, %s128
      %p130 = scmp.eq.s32.totalorder %s20, 0
      %p131 = por %p129, %p130
      %s132 = ssub.s32 %s14, %s21
      %p133 = scmp.eq.s32.totalorder %s132, 0
      %s135 = sadd.s32 %s134, 1
      %s136 = scalar_select %p133, %s134, %s135
      %p139 = pneg %p133
      %p140 = scmp.eq.s32.totalorder %s14, 3
      %p141 = por %p139, %p140
      %p142 = scmp.ne.s32.totalorder %s134, %s137
      %p143 = scmp.eq.s32.totalorder %s14, 0
      %p144 = por %p142, %p143
      %p145 = scmp.ne.s32.totalorder %s134, %s137
      %p146 = scmp.eq.s32.totalorder %s19, 3
      %p147 = por %p145, %p146
      %p148 = scmp.ne.s32.totalorder %s137, %s138
      %p149 = scmp.eq.s32.totalorder %s19, 0
      %p150 = por %p148, %p149
      %p151 = scmp.ne.s32.totalorder %s137, %s138
      %p152 = scmp.eq.s32.totalorder %s20, 3
      %p153 = por %p151, %p152
      %p155 = scmp.ne.s32.totalorder %s138, %s154
      %p156 = scmp.eq.s32.totalorder %s20, 0
      %p157 = por %p155, %p156
      %p158 = scmp.le.s32.totalorder 1, %s14
      %p159 = scmp.lt.s32.totalorder %s14, 5
      %p160 = pnand %p158, %p159
      %p161 = pneg %p160
      // Predicated region
      $region9: #{tpu_custom_call.1} parent=5 // pred_check
        _
      $region10: #{tpu_custom_call.1} parent=5 // pred_check_branch
        %163 = sbr.rel (%p160) target = $region12
      $region11: #{tpu_custom_call.1} parent=5 // pred_region
        %s164 = ssub.s32 %s14, 1
        // Predicated region
        $region13: #{tpu_custom_call.1} parent=11 // pred_check
          %p165 = pneg %p61
        $region14: #{tpu_custom_call.1} parent=11 // pred_check_branch
          %167 = sbr.rel (%p165) target = $region16
        $region15: #{tpu_custom_call.1} parent=11 // pred_region
          _
        $region16: #{tpu_custom_call.1} parent=11 // pred_fallthru
          _
        // Predicated region
        $region17: #{tpu_custom_call.1} parent=11 // pred_check
          %p168 = pneg %p82
        $region18: #{tpu_custom_call.1} parent=11 // pred_check_branch
          %170 = sbr.rel (%p168) target = $region20
        $region19: #{tpu_custom_call.1} parent=11 // pred_region
          _
        $region20: #{tpu_custom_call.1} parent=11 // pred_fallthru
          _
        // Predicated region
        $region21: #{tpu_custom_call.1} parent=11 // pred_check
          %p171 = pneg %p103
        $region22: #{tpu_custom_call.1} parent=11 // pred_check_branch
          %173 = sbr.rel (%p171) target = $region24
        $region23: #{tpu_custom_call.1} parent=11 // pred_region
          _
        $region24: #{tpu_custom_call.1} parent=11 // pred_fallthru
          _
        // Predicated region
        $region25: #{tpu_custom_call.1} parent=11 // pred_check
          %p174 = pneg %p124
        $region26: #{tpu_custom_call.1} parent=11 // pred_check_branch
          %176 = sbr.rel (%p174) target = $region28
        $region27: #{tpu_custom_call.1} parent=11 // pred_region
          _
        $region28: #{tpu_custom_call.1} parent=11 // pred_fallthru
          _
      $region12: #{tpu_custom_call.1} parent=5 // pred_fallthru
        _
      %p177 = scmp.lt.s32.totalorder %s14, 4
      // Predicated region
      $region29: #{tpu_custom_call.1} parent=5 // pred_check
        %p178 = pneg %p177
      $region30: #{tpu_custom_call.1} parent=5 // pred_check_branch
        %180 = sbr.rel (%p178) target = $region32
      $region31: #{tpu_custom_call.1} parent=5 // pred_region
        // Predicated region
        $region33: #{tpu_custom_call.1} parent=31 // pred_check
          %p181 = pneg %p34
        $region34: #{tpu_custom_call.1} parent=31 // pred_check_branch
          %183 = sbr.rel (%p181) target = $region36
        $region35: #{tpu_custom_call.1} parent=31 // pred_region
          %s184 = smul.u32 64, %s14
          %p185 = scmp.lt.s32.totalorder %s184, 255
          %s186 = scalar_select %p185, %s184, 255
          %s187 = smul.addr %s186, 8
          %s188 = scalar_lea.vmem %s0, %s187
          %s189 = smul.u32 64, %s14
        $region36: #{tpu_custom_call.1} parent=31 // pred_fallthru
          _
      $region32: #{tpu_custom_call.1} parent=5 // pred_fallthru
        _
      %p190 = scmp.le.s32.totalorder 1, %s14
      %p191 = scmp.lt.s32.totalorder %s14, 5
      %p192 = pnand %p190, %p191
      %p193 = pneg %p192
      // Predicated region
      $region37: #{tpu_custom_call.1} parent=5 // pred_check
        _
      $region38: #{tpu_custom_call.1} parent=5 // pred_check_branch
        %195 = sbr.rel (%p192) target = $region40
      $region39: #{tpu_custom_call.1} parent=5 // pred_region
        %s196 = ssub.s32 %s14, 1
        %s197 = smul.u32 64, %s19
        %p198 = scmp.lt.s32.totalorder %s197, 255
        %s199 = scalar_select %p198, %s197, 255
        %s200 = smul.addr %s199, 8
        %s201 = scalar_lea.vmem %s0, %s200
        %p202 = pneg %p40
        %p203 = pneg %p37
        %p204 = pneg %p61
        %p205 = pneg %p58
        %p206 = pneg %p82
        %p207 = pneg %p79
        %p208 = pneg %p103
        %p209 = pneg %p100
        %p210 = pneg %p124
        %p211 = pneg %p121
        %p212 = pneg %p150
        %p213 = pneg %p147
        %s214 = sand.u32 %s137, 1
        %s215 = scalar_lea.sflag [#allocation3], %s214
        %s216 = sand.u32 %s137, 1
        %s217 = smul.addr %s216, 512
        %s218 = scalar_lea.vmem [#allocation2], %s217
        %s219 = smul.u32 64, %s19
        %p220 = scmp.lt.s32.totalorder %s219, 255
        %s221 = scalar_select %p220, %s219, 255
        %s222 = smul.addr %s221, 8
        %s223 = scalar_lea.vmem %s0, %s222
        %s224 = smul.u32 64, %s19
        %s225 = smul.u32 64, %s19
        %v227 = vld [vmem:[%s223] sm:$0xff]
        %v228 = vld [vmem:[%s223 + $0x8] sm:$0xff]
        %v229 = vld [vmem:[%s223 + $0x10] sm:$0xff]
        %v230 = vld [vmem:[%s223 + $0x18] sm:$0xff]
        %v231 = vld [vmem:[%s223 + $0x20] sm:$0xff]
        %v232 = vld [vmem:[%s223 + $0x28] sm:$0xff]
        %v233 = vld [vmem:[%s223 + $0x30] sm:$0xff]
        %v234 = vld [vmem:[%s223 + $0x38] sm:$0xff]
        %v235 = vld [vmem:[%s223 + $0x40] sm:$0xff]
        %v236 = vld [vmem:[%s223 + $0x48] sm:$0xff]
        %v237 = vld [vmem:[%s223 + $0x50] sm:$0xff]
        %v238 = vld [vmem:[%s223 + $0x58] sm:$0xff]
        %v239 = vld [vmem:[%s223 + $0x60] sm:$0xff]
        %v240 = vld [vmem:[%s223 + $0x68] sm:$0xff]
        %v241 = vld [vmem:[%s223 + $0x70] sm:$0xff]
        %v242 = vld [vmem:[%s223 + $0x78] sm:$0xff]
        %v243 = vld [vmem:[%s223 + $0x80] sm:$0xff]
        %v244 = vld [vmem:[%s223 + $0x88] sm:$0xff]
        %v245 = vld [vmem:[%s223 + $0x90] sm:$0xff]
        %v246 = vld [vmem:[%s223 + $0x98] sm:$0xff]
        %v247 = vld [vmem:[%s223 + $0xa0] sm:$0xff]
        %v248 = vld [vmem:[%s223 + $0xa8] sm:$0xff]
        %v249 = vld [vmem:[%s223 + $0xb0] sm:$0xff]
        %v250 = vld [vmem:[%s223 + $0xb8] sm:$0xff]
        %v251 = vld [vmem:[%s223 + $0xc0] sm:$0xff]
        %v252 = vld [vmem:[%s223 + $0xc8] sm:$0xff]
        %v253 = vld [vmem:[%s223 + $0xd0] sm:$0xff]
        %v254 = vld [vmem:[%s223 + $0xd8] sm:$0xff]
        %v255 = vld [vmem:[%s223 + $0xe0] sm:$0xff]
        %v256 = vld [vmem:[%s223 + $0xe8] sm:$0xff]
        %v257 = vld [vmem:[%s223 + $0xf0] sm:$0xff]
        %v258 = vld [vmem:[%s223 + $0xf8] sm:$0xff]
        %v259 = vld [vmem:[%s223 + $0x100] sm:$0xff]
        %v260 = vld [vmem:[%s223 + $0x108] sm:$0xff]
        %v261 = vld [vmem:[%s223 + $0x110] sm:$0xff]
        %v262 = vld [vmem:[%s223 + $0x118] sm:$0xff]
        %v263 = vld [vmem:[%s223 + $0x120] sm:$0xff]
        %v264 = vld [vmem:[%s223 + $0x128] sm:$0xff]
        %v265 = vld [vmem:[%s223 + $0x130] sm:$0xff]
        %v266 = vld [vmem:[%s223 + $0x138] sm:$0xff]
        %v267 = vld [vmem:[%s223 + $0x140] sm:$0xff]
        %v268 = vld [vmem:[%s223 + $0x148] sm:$0xff]
        %v269 = vld [vmem:[%s223 + $0x150] sm:$0xff]
        %v270 = vld [vmem:[%s223 + $0x158] sm:$0xff]
        %v271 = vld [vmem:[%s223 + $0x160] sm:$0xff]
        %v272 = vld [vmem:[%s223 + $0x168] sm:$0xff]
        %v273 = vld [vmem:[%s223 + $0x170] sm:$0xff]
        %v274 = vld [vmem:[%s223 + $0x178] sm:$0xff]
        %v275 = vld [vmem:[%s223 + $0x180] sm:$0xff]
        %v276 = vld [vmem:[%s223 + $0x188] sm:$0xff]
        %v277 = vld [vmem:[%s223 + $0x190] sm:$0xff]
        %v278 = vld [vmem:[%s223 + $0x198] sm:$0xff]
        %v279 = vld [vmem:[%s223 + $0x1a0] sm:$0xff]
        %v280 = vld [vmem:[%s223 + $0x1a8] sm:$0xff]
        %v281 = vld [vmem:[%s223 + $0x1b0] sm:$0xff]
        %v282 = vld [vmem:[%s223 + $0x1b8] sm:$0xff]
        %v283 = vld [vmem:[%s223 + $0x1c0] sm:$0xff]
        %v284 = vld [vmem:[%s223 + $0x1c8] sm:$0xff]
        %v285 = vld [vmem:[%s223 + $0x1d0] sm:$0xff]
        %v286 = vld [vmem:[%s223 + $0x1d8] sm:$0xff]
        %v287 = vld [vmem:[%s223 + $0x1e0] sm:$0xff]
        %v288 = vld [vmem:[%s223 + $0x1e8] sm:$0xff]
        %v289 = vld [vmem:[%s223 + $0x1f0] sm:$0xff]
        %v290 = vld [vmem:[%s223 + $0x1f8] sm:$0xff]
        %v291 = vpack.c.bf16 %v228, %v227
        %v292 = vpack.c.bf16 %v230, %v229
        %v293 = vpack.c.bf16 %v232, %v231
        %v294 = vpack.c.bf16 %v234, %v233
        %v295 = vpack.c.bf16 %v236, %v235
        %v296 = vpack.c.bf16 %v238, %v237
        %v297 = vpack.c.bf16 %v240, %v239
        %v298 = vpack.c.bf16 %v242, %v241
        %v299 = vpack.c.bf16 %v244, %v243
        %v300 = vpack.c.bf16 %v246, %v245
        %v301 = vpack.c.bf16 %v248, %v247
        %v302 = vpack.c.bf16 %v250, %v249
        %v303 = vpack.c.bf16 %v252, %v251
        %v304 = vpack.c.bf16 %v254, %v253
        %v305 = vpack.c.bf16 %v256, %v255
        %v306 = vpack.c.bf16 %v258, %v257
        %v307 = vpack.c.bf16 %v260, %v259
        %v308 = vpack.c.bf16 %v262, %v261
        %v309 = vpack.c.bf16 %v264, %v263
        %v310 = vpack.c.bf16 %v266, %v265
        %v311 = vpack.c.bf16 %v268, %v267
        %v312 = vpack.c.bf16 %v270, %v269
        %v313 = vpack.c.bf16 %v272, %v271
        %v314 = vpack.c.bf16 %v274, %v273
        %v315 = vpack.c.bf16 %v276, %v275
        %v316 = vpack.c.bf16 %v278, %v277
        %v317 = vpack.c.bf16 %v280, %v279
        %v318 = vpack.c.bf16 %v282, %v281
        %v319 = vpack.c.bf16 %v284, %v283
        %v320 = vpack.c.bf16 %v286, %v285
        %v321 = vpack.c.bf16 %v288, %v287
        %v322 = vpack.c.bf16 %v290, %v289
        %v323 = vld [vmem:[%s2] sm:$0x1]
        %v324 = vld [vmem:[%s4] sm:$0x1]
        %v325 = vld [vmem:[%s1] sm:$0xf]
        %v326 = vld [vmem:[%s1 + $0x4] sm:$0xf]
        %v327 = vld [vmem:[%s1 + $0x8] sm:$0xf]
        %v328 = vld [vmem:[%s1 + $0xc] sm:$0xf]
        %v330 = vlaneseq
        %v331 = vshrl.u32 %v330, 7
        %v332 = vsub.s32 0, %v331
        %v333 = vrot.slane %v323, %v332
        %v339 = vunpack.c.l.b16 %v325
        %v340 = vunpack.c.l.b16 %v326
        %v341 = vunpack.c.l.b16 %v327
        %v342 = vunpack.c.l.b16 %v328
        %v343 = vpack.c.b16 %v340, %v339
        %v344 = vpack.c.b16 %v342, %v341
        %vm347 = vcmask 261120
        %v349 = vsel %vm347, %v291, 0
        %v352 = vsel %vm347, %v292, 0
        %v355 = vsel %vm347, %v293, 0
        %v358 = vsel %vm347, %v294, 0
        %v361 = vsel %vm347, %v295, 0
        %v364 = vsel %vm347, %v296, 0
        %v367 = vsel %vm347, %v297, 0
        %v370 = vsel %vm347, %v298, 0
        %v373 = vsel %vm347, %v299, 0
        %v376 = vsel %vm347, %v300, 0
        %v379 = vsel %vm347, %v301, 0
        %v382 = vsel %vm347, %v302, 0
        %v385 = vsel %vm347, %v303, 0
        %v388 = vsel %vm347, %v304, 0
        %v391 = vsel %vm347, %v305, 0
        %v394 = vsel %vm347, %v306, 0
        %v397 = vsel %vm347, %v307, 0
        %v400 = vsel %vm347, %v308, 0
        %v403 = vsel %vm347, %v309, 0
        %v406 = vsel %vm347, %v310, 0
        %v409 = vsel %vm347, %v311, 0
        %v412 = vsel %vm347, %v312, 0
        %v415 = vsel %vm347, %v313, 0
        %v418 = vsel %vm347, %v314, 0
        %v421 = vsel %vm347, %v315, 0
        %v424 = vsel %vm347, %v316, 0
        %v427 = vsel %vm347, %v317, 0
        %v430 = vsel %vm347, %v318, 0
        %v433 = vsel %vm347, %v319, 0
        %v436 = vsel %vm347, %v320, 0
        %v439 = vsel %vm347, %v321, 0
        %v442 = vsel %vm347, %v322, 0
        %444 = vmatprep.subr.bf16.mxu0 0
        %445 = vmatpush1.bf16.msra.mxu0 %v343
        %446 = vmatprep.subr.bf16.mxu0 0
        %447 = vmatpush1.bf16.msra.mxu0 %v344
        %448 = vmatprep.subr.bf16.mxu0 0
        %449 = vmatpush1.bf16.msra.mxu0 0
        %450 = vmatprep.subr.bf16.mxu0 0
        %451 = vmatpush1.bf16.msra.mxu0 0
        %452 = vmatprep.subr.bf16.mxu0 0
        %453 = vmatpush1.bf16.msra.mxu0 0
        %454 = vmatprep.subr.bf16.mxu0 0
        %455 = vmatpush1.bf16.msra.mxu0 0
        %456 = vmatprep.subr.bf16.mxu0 0
        %457 = vmatpush1.bf16.msra.mxu0 0
        %458 = vmatprep.subr.bf16.mxu0 0
        %459 = vmatpush1.bf16.msra.mxu0 0
        %460 = vmatprep.subr.bf16.mxu0 0
        %461 = vmatpush1.bf16.msra.mxu0 0
        %462 = vmatprep.subr.bf16.mxu0 0
        %463 = vmatpush1.bf16.msra.mxu0 0
        %464 = vmatprep.subr.bf16.mxu0 0
        %465 = vmatpush1.bf16.msra.mxu0 0
        %466 = vmatprep.subr.bf16.mxu0 0
        %467 = vmatpush1.bf16.msra.mxu0 0
        %468 = vmatprep.subr.bf16.mxu0 0
        %469 = vmatpush1.bf16.msra.mxu0 0
        %470 = vmatprep.subr.bf16.mxu0 0
        %471 = vmatpush1.bf16.msra.mxu0 0
        %472 = vmatprep.subr.bf16.mxu0 0
        %473 = vmatpush1.bf16.msra.mxu0 0
        %474 = vmatprep.subr.bf16.mxu0 0
        %475 = vmatpush1.bf16.msra.mxu0 0
        %476 = vmatprep.mubr.bf16.mxu0 0
        %477 = vmatmul.mubr.bf16.gmra.mrb[0].mxu0 %v349
        %v478 = vpop.f32.mrb[0].mxu0
        %v479 = vadd.f32 %v333, %v478
        %v480 = vpop.f32.mrb[0].mxu0
        %v481 = vpop.f32.mrb[0].mxu0
        %v482 = vadd.f32 %v333, %v481
        %v483 = vpop.f32.mrb[0].mxu0
        %484 = vmatprep.mubr.bf16.mxu0 0
        %485 = vmatmul.mubr.bf16.gmra.mrb[0].mxu0 %v352
        %v486 = vpop.f32.mrb[0].mxu0
        %v487 = vadd.f32 %v333, %v486
        %v488 = vpop.f32.mrb[0].mxu0
        %v489 = vpop.f32.mrb[0].mxu0
        %v490 = vadd.f32 %v333, %v489
        %v491 = vpop.f32.mrb[0].mxu0
        %492 = vmatprep.mubr.bf16.mxu0 0
        %493 = vmatmul.mubr.bf16.gmra.mrb[0].mxu0 %v355
        %v494 = vpop.f32.mrb[0].mxu0
        %v495 = vadd.f32 %v333, %v494
        %v496 = vpop.f32.mrb[0].mxu0
        %v497 = vpop.f32.mrb[0].mxu0
        %v498 = vadd.f32 %v333, %v497
        %v499 = vpop.f32.mrb[0].mxu0
        %500 = vmatprep.mubr.bf16.mxu0 0
        %501 = vmatmul.mubr.bf16.gmra.mrb[0].mxu0 %v358
        %v502 = vpop.f32.mrb[0].mxu0
        %v503 = vadd.f32 %v333, %v502
        %v504 = vpop.f32.mrb[0].mxu0
        %v505 = vpop.f32.mrb[0].mxu0
        %v506 = vadd.f32 %v333, %v505
        %v507 = vpop.f32.mrb[0].mxu0
        %508 = vmatprep.mubr.bf16.mxu0 0
        %509 = vmatmul.mubr.bf16.gmra.mrb[0].mxu0 %v361
        %v510 = vpop.f32.mrb[0].mxu0
        %v511 = vadd.f32 %v333, %v510
        %v512 = vpop.f32.mrb[0].mxu0
        %v513 = vpop.f32.mrb[0].mxu0
        %v514 = vadd.f32 %v333, %v513
        %v515 = vpop.f32.mrb[0].mxu0
        %516 = vmatprep.mubr.bf16.mxu0 0
        %517 = vmatmul.mubr.bf16.gmra.mrb[0].mxu0 %v364
        %v518 = vpop.f32.mrb[0].mxu0
        %v519 = vadd.f32 %v333, %v518
        %v520 = vpop.f32.mrb[0].mxu0
        %v521 = vpop.f32.mrb[0].mxu0
        %v522 = vadd.f32 %v333, %v521
        %v523 = vpop.f32.mrb[0].mxu0
        %524 = vmatprep.mubr.bf16.mxu0 0
        %525 = vmatmul.mubr.bf16.gmra.mrb[0].mxu0 %v367
        %v526 = vpop.f32.mrb[0].mxu0
        %v527 = vadd.f32 %v333, %v526
        %v528 = vpop.f32.mrb[0].mxu0
        %v529 = vpop.f32.mrb[0].mxu0
        %v530 = vadd.f32 %v333, %v529
        %v531 = vpop.f32.mrb[0].mxu0
        %532 = vmatprep.mubr.bf16.mxu0 0
        %533 = vmatmul.mubr.bf16.gmra.mrb[0].mxu0 %v370
        %v534 = vpop.f32.mrb[0].mxu0
        %v535 = vadd.f32 %v333, %v534
        %v536 = vpop.f32.mrb[0].mxu0
        %v537 = vpop.f32.mrb[0].mxu0
        %v538 = vadd.f32 %v333, %v537
        %v539 = vpop.f32.mrb[0].mxu0
        %540 = vmatprep.mubr.bf16.mxu0 0
        %541 = vmatmul.mubr.bf16.gmra.mrb[0].mxu0 %v373
        %v542 = vpop.f32.mrb[0].mxu0
        %v543 = vadd.f32 %v333, %v542
        %v544 = vpop.f32.mrb[0].mxu0
        %v545 = vpop.f32.mrb[0].mxu0
        %v546 = vadd.f32 %v333, %v545
        %v547 = vpop.f32.mrb[0].mxu0
        %548 = vmatprep.mubr.bf16.mxu0 0
        %549 = vmatmul.mubr.bf16.gmra.mrb[0].mxu0 %v376
        %v550 = vpop.f32.mrb[0].mxu0
        %v551 = vadd.f32 %v333, %v550
        %v552 = vpop.f32.mrb[0].mxu0
        %v553 = vpop.f32.mrb[0].mxu0
        %v554 = vadd.f32 %v333, %v553
        %v555 = vpop.f32.mrb[0].mxu0
        %556 = vmatprep.mubr.bf16.mxu0 0
        %557 = vmatmul.mubr.bf16.gmra.mrb[0].mxu0 %v379
        %v558 = vpop.f32.mrb[0].mxu0
        %v559 = vadd.f32 %v333, %v558
        %v560 = vpop.f32.mrb[0].mxu0
        %v561 = vpop.f32.mrb[0].mxu0
        %v562 = vadd.f32 %v333, %v561
        %v563 = vpop.f32.mrb[0].mxu0
        %564 = vmatprep.mubr.bf16.mxu0 0
        %565 = vmatmul.mubr.bf16.gmra.mrb[0].mxu0 %v382
        %v566 = vpop.f32.mrb[0].mxu0
        %v567 = vadd.f32 %v333, %v566
        %v568 = vpop.f32.mrb[0].mxu0
        %v569 = vpop.f32.mrb[0].mxu0
        %v570 = vadd.f32 %v333, %v569
        %v571 = vpop.f32.mrb[0].mxu0
        %572 = vmatprep.mubr.bf16.mxu0 0
        %573 = vmatmul.mubr.bf16.gmra.mrb[0].mxu0 %v385
        %v574 = vpop.f32.mrb[0].mxu0
        %v575 = vadd.f32 %v333, %v574
        %v576 = vpop.f32.mrb[0].mxu0
        %v577 = vpop.f32.mrb[0].mxu0
        %v578 = vadd.f32 %v333, %v577
        %v579 = vpop.f32.mrb[0].mxu0
        %580 = vmatprep.mubr.bf16.mxu0 0
        %581 = vmatmul.mubr.bf16.gmra.mrb[0].mxu0 %v388
        %v582 = vpop.f32.mrb[0].mxu0
        %v583 = vadd.f32 %v333, %v582
        %v584 = vpop.f32.mrb[0].mxu0
        %v585 = vpop.f32.mrb[0].mxu0
        %v586 = vadd.f32 %v333, %v585
        %v587 = vpop.f32.mrb[0].mxu0
        %588 = vmatprep.mubr.bf16.mxu0 0
        %589 = vmatmul.mubr.bf16.gmra.mrb[0].mxu0 %v391
        %v590 = vpop.f32.mrb[0].mxu0
        %v591 = vadd.f32 %v333, %v590
        %v592 = vpop.f32.mrb[0].mxu0
        %v593 = vpop.f32.mrb[0].mxu0
        %v594 = vadd.f32 %v333, %v593
        %v595 = vpop.f32.mrb[0].mxu0
        %596 = vmatprep.mubr.bf16.mxu0 0
        %597 = vmatmul.mubr.bf16.gmra.mrb[0].mxu0 %v394
        %v598 = vpop.f32.mrb[0].mxu0
        %v599 = vadd.f32 %v333, %v598
        %v600 = vpop.f32.mrb[0].mxu0
        %v601 = vpop.f32.mrb[0].mxu0
        %v602 = vadd.f32 %v333, %v601
        %v603 = vpop.f32.mrb[0].mxu0
        %604 = vmatprep.mubr.bf16.mxu0 0
        %605 = vmatmul.mubr.bf16.gmra.mrb[0].mxu0 %v397
        %v606 = vpop.f32.mrb[0].mxu0
        %v607 = vadd.f32 %v333, %v606
        %v608 = vpop.f32.mrb[0].mxu0
        %v609 = vpop.f32.mrb[0].mxu0
        %v610 = vadd.f32 %v333, %v609
        %v611 = vpop.f32.mrb[0].mxu0
        %612 = vmatprep.mubr.bf16.mxu0 0
        %613 = vmatmul.mubr.bf16.gmra.mrb[0].mxu0 %v400
        %v614 = vpop.f32.mrb[0].mxu0
        %v615 = vadd.f32 %v333, %v614
        %v616 = vpop.f32.mrb[0].mxu0
        %v617 = vpop.f32.mrb[0].mxu0
        %v618 = vadd.f32 %v333, %v617
        %v619 = vpop.f32.mrb[0].mxu0
        %620 = vmatprep.mubr.bf16.mxu0 0
        %621 = vmatmul.mubr.bf16.gmra.mrb[0].mxu0 %v403
        %v622 = vpop.f32.mrb[0].mxu0
        %v623 = vadd.f32 %v333, %v622
        %v624 = vpop.f32.mrb[0].mxu0
        %v625 = vpop.f32.mrb[0].mxu0
        %v626 = vadd.f32 %v333, %v625
        %v627 = vpop.f32.mrb[0].mxu0
        %628 = vmatprep.mubr.bf16.mxu0 0
        %629 = vmatmul.mubr.bf16.gmra.mrb[0].mxu0 %v406
        %v630 = vpop.f32.mrb[0].mxu0
        %v631 = vadd.f32 %v333, %v630
        %v632 = vpop.f32.mrb[0].mxu0
        %v633 = vpop.f32.mrb[0].mxu0
        %v634 = vadd.f32 %v333, %v633
        %v635 = vpop.f32.mrb[0].mxu0
        %636 = vmatprep.mubr.bf16.mxu0 0
        %637 = vmatmul.mubr.bf16.gmra.mrb[0].mxu0 %v409
        %v638 = vpop.f32.mrb[0].mxu0
        %v639 = vadd.f32 %v333, %v638
        %v640 = vpop.f32.mrb[0].mxu0
        %v641 = vpop.f32.mrb[0].mxu0
        %v642 = vadd.f32 %v333, %v641
        %v643 = vpop.f32.mrb[0].mxu0
        %644 = vmatprep.mubr.bf16.mxu0 0
        %645 = vmatmul.mubr.bf16.gmra.mrb[0].mxu0 %v412
        %v646 = vpop.f32.mrb[0].mxu0
        %v647 = vadd.f32 %v333, %v646
        %v648 = vpop.f32.mrb[0].mxu0
        %v649 = vpop.f32.mrb[0].mxu0
        %v650 = vadd.f32 %v333, %v649
        %v651 = vpop.f32.mrb[0].mxu0
        %652 = vmatprep.mubr.bf16.mxu0 0
        %653 = vmatmul.mubr.bf16.gmra.mrb[0].mxu0 %v415
        %v654 = vpop.f32.mrb[0].mxu0
        %v655 = vadd.f32 %v333, %v654
        %v656 = vpop.f32.mrb[0].mxu0
        %v657 = vpop.f32.mrb[0].mxu0
        %v658 = vadd.f32 %v333, %v657
        %v659 = vpop.f32.mrb[0].mxu0
        %660 = vmatprep.mubr.bf16.mxu0 0
        %661 = vmatmul.mubr.bf16.gmra.mrb[0].mxu0 %v418
        %v662 = vpop.f32.mrb[0].mxu0
        %v663 = vadd.f32 %v333, %v662
        %v664 = vpop.f32.mrb[0].mxu0
        %v665 = vpop.f32.mrb[0].mxu0
        %v666 = vadd.f32 %v333, %v665
        %v667 = vpop.f32.mrb[0].mxu0
        %668 = vmatprep.mubr.bf16.mxu0 0
        %669 = vmatmul.mubr.bf16.gmra.mrb[0].mxu0 %v421
        %v670 = vpop.f32.mrb[0].mxu0
        %v671 = vadd.f32 %v333, %v670
        %v672 = vpop.f32.mrb[0].mxu0
        %v673 = vpop.f32.mrb[0].mxu0
        %v674 = vadd.f32 %v333, %v673
        %v675 = vpop.f32.mrb[0].mxu0
        %676 = vmatprep.mubr.bf16.mxu0 0
        %677 = vmatmul.mubr.bf16.gmra.mrb[0].mxu0 %v424
        %v678 = vpop.f32.mrb[0].mxu0
        %v679 = vadd.f32 %v333, %v678
        %v680 = vpop.f32.mrb[0].mxu0
        %v681 = vpop.f32.mrb[0].mxu0
        %v682 = vadd.f32 %v333, %v681
        %v683 = vpop.f32.mrb[0].mxu0
        %684 = vmatprep.mubr.bf16.mxu0 0
        %685 = vmatmul.mubr.bf16.gmra.mrb[0].mxu0 %v427
        %v686 = vpop.f32.mrb[0].mxu0
        %v687 = vadd.f32 %v333, %v686
        %v688 = vpop.f32.mrb[0].mxu0
        %v689 = vpop.f32.mrb[0].mxu0
        %v690 = vadd.f32 %v333, %v689
        %v691 = vpop.f32.mrb[0].mxu0
        %692 = vmatprep.mubr.bf16.mxu0 0
        %693 = vmatmul.mubr.bf16.gmra.mrb[0].mxu0 %v430
        %v694 = vpop.f32.mrb[0].mxu0
        %v695 = vadd.f32 %v333, %v694
        %v696 = vpop.f32.mrb[0].mxu0
        %v697 = vpop.f32.mrb[0].mxu0
        %v698 = vadd.f32 %v333, %v697
        %v699 = vpop.f32.mrb[0].mxu0
        %700 = vmatprep.mubr.bf16.mxu0 0
        %701 = vmatmul.mubr.bf16.gmra.mrb[0].mxu0 %v433
        %v702 = vpop.f32.mrb[0].mxu0
        %v703 = vadd.f32 %v333, %v702
        %v704 = vpop.f32.mrb[0].mxu0
        %v705 = vpop.f32.mrb[0].mxu0
        %v706 = vadd.f32 %v333, %v705
        %v707 = vpop.f32.mrb[0].mxu0
        %708 = vmatprep.mubr.bf16.mxu0 0
        %709 = vmatmul.mubr.bf16.gmra.mrb[0].mxu0 %v436
        %v710 = vpop.f32.mrb[0].mxu0
        %v711 = vadd.f32 %v333, %v710
        %v712 = vpop.f32.mrb[0].mxu0
        %v713 = vpop.f32.mrb[0].mxu0
        %v714 = vadd.f32 %v333, %v713
        %v715 = vpop.f32.mrb[0].mxu0
        %716 = vmatprep.mubr.bf16.mxu0 0
        %717 = vmatmul.mubr.bf16.gmra.mrb[0].mxu0 %v439
        %v718 = vpop.f32.mrb[0].mxu0
        %v719 = vadd.f32 %v333, %v718
        %v720 = vpop.f32.mrb[0].mxu0
        %v721 = vpop.f32.mrb[0].mxu0
        %v722 = vadd.f32 %v333, %v721
        %v723 = vpop.f32.mrb[0].mxu0
        %724 = vmatprep.mubr.bf16.mxu0 0
        %725 = vmatmul.mubr.bf16.gmra.mrb[0].mxu0 %v442
        %v726 = vpop.f32.mrb[0].mxu0
        %v727 = vadd.f32 %v333, %v726
        %v728 = vpop.f32.mrb[0].mxu0
        %v729 = vpop.f32.mrb[0].mxu0
        %v730 = vadd.f32 %v333, %v729
        %v731 = vpop.f32.mrb[0].mxu0
        %732 = vdwg.mxu0
        %v733 = vmax.f32 %v479, 0.0
        %v734 = vmax.f32 %v482, 0.0
        %v735 = vmax.f32 %v487, 0.0
        %v736 = vmax.f32 %v490, 0.0
        %v737 = vmax.f32 %v495, 0.0
        %v738 = vmax.f32 %v498, 0.0
        %v739 = vmax.f32 %v503, 0.0
        %v740 = vmax.f32 %v506, 0.0
        %v741 = vmax.f32 %v511, 0.0
        %v742 = vmax.f32 %v514, 0.0
        %v743 = vmax.f32 %v519, 0.0
        %v744 = vmax.f32 %v522, 0.0
        %v745 = vmax.f32 %v527, 0.0
        %v746 = vmax.f32 %v530, 0.0
        %v747 = vmax.f32 %v535, 0.0
        %v748 = vmax.f32 %v538, 0.0
        %v749 = vmax.f32 %v543, 0.0
        %v750 = vmax.f32 %v546, 0.0
        %v751 = vmax.f32 %v551, 0.0
        %v752 = vmax.f32 %v554, 0.0
        %v753 = vmax.f32 %v559, 0.0
        %v754 = vmax.f32 %v562, 0.0
        %v755 = vmax.f32 %v567, 0.0
        %v756 = vmax.f32 %v570, 0.0
        %v757 = vmax.f32 %v575, 0.0
        %v758 = vmax.f32 %v578, 0.0
        %v759 = vmax.f32 %v583, 0.0
        %v760 = vmax.f32 %v586, 0.0
        %v761 = vmax.f32 %v591, 0.0
        %v762 = vmax.f32 %v594, 0.0
        %v763 = vmax.f32 %v599, 0.0
        %v764 = vmax.f32 %v602, 0.0
        %v765 = vmax.f32 %v607, 0.0
        %v766 = vmax.f32 %v610, 0.0
        %v767 = vmax.f32 %v615, 0.0
        %v768 = vmax.f32 %v618, 0.0
        %v769 = vmax.f32 %v623, 0.0
        %v770 = vmax.f32 %v626, 0.0
        %v771 = vmax.f32 %v631, 0.0
        %v772 = vmax.f32 %v634, 0.0
        %v773 = vmax.f32 %v639, 0.0
        %v774 = vmax.f32 %v642, 0.0
        %v775 = vmax.f32 %v647, 0.0
        %v776 = vmax.f32 %v650, 0.0
        %v777 = vmax.f32 %v655, 0.0
        %v778 = vmax.f32 %v658, 0.0
        %v779 = vmax.f32 %v663, 0.0
        %v780 = vmax.f32 %v666, 0.0
        %v781 = vmax.f32 %v671, 0.0
        %v782 = vmax.f32 %v674, 0.0
        %v783 = vmax.f32 %v679, 0.0
        %v784 = vmax.f32 %v682, 0.0
        %v785 = vmax.f32 %v687, 0.0
        %v786 = vmax.f32 %v690, 0.0
        %v787 = vmax.f32 %v695, 0.0
        %v788 = vmax.f32 %v698, 0.0
        %v789 = vmax.f32 %v703, 0.0
        %v790 = vmax.f32 %v706, 0.0
        %v791 = vmax.f32 %v711, 0.0
        %v792 = vmax.f32 %v714, 0.0
        %v793 = vmax.f32 %v719, 0.0
        %v794 = vmax.f32 %v722, 0.0
        %v795 = vmax.f32 %v727, 0.0
        %v796 = vmax.f32 %v730, 0.0
        %v797 = vpack.c.bf16 %v734, %v733
        %v798 = vpack.c.bf16 %v736, %v735
        %v799 = vpack.c.bf16 %v738, %v737
        %v800 = vpack.c.bf16 %v740, %v739
        %v801 = vpack.c.bf16 %v742, %v741
        %v802 = vpack.c.bf16 %v744, %v743
        %v803 = vpack.c.bf16 %v746, %v745
        %v804 = vpack.c.bf16 %v748, %v747
        %v805 = vpack.c.bf16 %v750, %v749
        %v806 = vpack.c.bf16 %v752, %v751
        %v807 = vpack.c.bf16 %v754, %v753
        %v808 = vpack.c.bf16 %v756, %v755
        %v809 = vpack.c.bf16 %v758, %v757
        %v810 = vpack.c.bf16 %v760, %v759
        %v811 = vpack.c.bf16 %v762, %v761
        %v812 = vpack.c.bf16 %v764, %v763
        %v813 = vpack.c.bf16 %v766, %v765
        %v814 = vpack.c.bf16 %v768, %v767
        %v815 = vpack.c.bf16 %v770, %v769
        %v816 = vpack.c.bf16 %v772, %v771
        %v817 = vpack.c.bf16 %v774, %v773
        %v818 = vpack.c.bf16 %v776, %v775
        %v819 = vpack.c.bf16 %v778, %v777
        %v820 = vpack.c.bf16 %v780, %v779
        %v821 = vpack.c.bf16 %v782, %v781
        %v822 = vpack.c.bf16 %v784, %v783
        %v823 = vpack.c.bf16 %v786, %v785
        %v824 = vpack.c.bf16 %v788, %v787
        %v825 = vpack.c.bf16 %v790, %v789
        %v826 = vpack.c.bf16 %v792, %v791
        %v827 = vpack.c.bf16 %v794, %v793
        %v828 = vpack.c.bf16 %v796, %v795
        %v829 = vld [vmem:[%s3] sm:$0xf]
        %v830 = vld [vmem:[%s3 + $0x4] sm:$0xf]
        %v831 = vld [vmem:[%s3 + $0x8] sm:$0xf]
        %v832 = vld [vmem:[%s3 + $0xc] sm:$0xf]
        %v833 = vld [vmem:[%s3 + $0x10] sm:$0xf]
        %v834 = vld [vmem:[%s3 + $0x14] sm:$0xf]
        %v835 = vld [vmem:[%s3 + $0x18] sm:$0xf]
        %v836 = vld [vmem:[%s3 + $0x1c] sm:$0xf]
        %v838 = vlaneseq
        %v839 = vshrl.u32 %v838, 7
        %v840 = vsub.s32 0, %v839
        %v841 = vrot.slane %v324, %v840
        %v851 = vunpack.c.l.b16 %v829
        %v852 = vunpack.c.l.b16 %v830
        %v853 = vunpack.c.l.b16 %v831
        %v854 = vunpack.c.l.b16 %v832
        %v855 = vunpack.c.l.b16 %v833
        %v856 = vunpack.c.l.b16 %v834
        %v857 = vunpack.c.l.b16 %v835
        %v858 = vunpack.c.l.b16 %v836
        %v859 = vpack.c.b16 %v852, %v851
        %v860 = vpack.c.b16 %v854, %v853
        %v861 = vpack.c.b16 %v856, %v855
        %v862 = vpack.c.b16 %v858, %v857
        %vm867 = vcmask 523264
        %v869 = vsel %vm867, %v797, 0
        %v872 = vsel %vm867, %v798, 0
        %v875 = vsel %vm867, %v799, 0
        %v878 = vsel %vm867, %v800, 0
        %v881 = vsel %vm867, %v801, 0
        %v884 = vsel %vm867, %v802, 0
        %v887 = vsel %vm867, %v803, 0
        %v890 = vsel %vm867, %v804, 0
        %v893 = vsel %vm867, %v805, 0
        %v896 = vsel %vm867, %v806, 0
        %v899 = vsel %vm867, %v807, 0
        %v902 = vsel %vm867, %v808, 0
        %v905 = vsel %vm867, %v809, 0
        %v908 = vsel %vm867, %v810, 0
        %v911 = vsel %vm867, %v811, 0
        %v914 = vsel %vm867, %v812, 0
        %v917 = vsel %vm867, %v813, 0
        %v920 = vsel %vm867, %v814, 0
        %v923 = vsel %vm867, %v815, 0
        %v926 = vsel %vm867, %v816, 0
        %v929 = vsel %vm867, %v817, 0
        %v932 = vsel %vm867, %v818, 0
        %v935 = vsel %vm867, %v819, 0
        %v938 = vsel %vm867, %v820, 0
        %v941 = vsel %vm867, %v821, 0
        %v944 = vsel %vm867, %v822, 0
        %v947 = vsel %vm867, %v823, 0
        %v950 = vsel %vm867, %v824, 0
        %v953 = vsel %vm867, %v825, 0
        %v956 = vsel %vm867, %v826, 0
        %v959 = vsel %vm867, %v827, 0
        %v962 = vsel %vm867, %v828, 0
        %964 = vmatprep.subr.bf16.mxu0 0
        %965 = vmatpush1.bf16.msra.mxu0 %v859
        %966 = vmatprep.subr.bf16.mxu0 0
        %967 = vmatpush1.bf16.msra.mxu0 %v860
        %968 = vmatprep.subr.bf16.mxu0 0
        %969 = vmatpush1.bf16.msra.mxu0 %v861
        %970 = vmatprep.subr.bf16.mxu0 0
        %971 = vmatpush1.bf16.msra.mxu0 %v862
        %972 = vmatprep.subr.bf16.mxu0 0
        %973 = vmatpush1.bf16.msra.mxu0 0
        %974 = vmatprep.subr.bf16.mxu0 0
        %975 = vmatpush1.bf16.msra.mxu0 0
        %976 = vmatprep.subr.bf16.mxu0 0
        %977 = vmatpush1.bf16.msra.mxu0 0
        %978 = vmatprep.subr.bf16.mxu0 0
        %979 = vmatpush1.bf16.msra.mxu0 0
        %980 = vmatprep.subr.bf16.mxu0 0
        %981 = vmatpush1.bf16.msra.mxu0 0
        %982 = vmatprep.subr.bf16.mxu0 0
        %983 = vmatpush1.bf16.msra.mxu0 0
        %984 = vmatprep.subr.bf16.mxu0 0
        %985 = vmatpush1.bf16.msra.mxu0 0
        %986 = vmatprep.subr.bf16.mxu0 0
        %987 = vmatpush1.bf16.msra.mxu0 0
        %988 = vmatprep.subr.bf16.mxu0 0
        %989 = vmatpush1.bf16.msra.mxu0 0
        %990 = vmatprep.subr.bf16.mxu0 0
        %991 = vmatpush1.bf16.msra.mxu0 0
        %992 = vmatprep.subr.bf16.mxu0 0
        %993 = vmatpush1.bf16.msra.mxu0 0
        %994 = vmatprep.subr.bf16.mxu0 0
        %995 = vmatpush1.bf16.msra.mxu0 0
        %996 = vmatprep.mubr.bf16.mxu0 0
        %997 = vmatmul.mubr.bf16.gmra.mrb[0].mxu0 %v869
        %v998 = vpop.f32.mrb[0].mxu0
        %v999 = vadd.f32 %v841, %v998
        %v1000 = vpop.f32.mrb[0].mxu0
        %v1001 = vpop.f32.mrb[0].mxu0
        %v1002 = vadd.f32 %v841, %v1001
        %v1003 = vpop.f32.mrb[0].mxu0
        %1004 = vmatprep.mubr.bf16.mxu0 0
        %1005 = vmatmul.mubr.bf16.gmra.mrb[0].mxu0 %v872
        %v1006 = vpop.f32.mrb[0].mxu0
        %v1007 = vadd.f32 %v841, %v1006
        %v1008 = vpop.f32.mrb[0].mxu0
        %v1009 = vpop.f32.mrb[0].mxu0
        %v1010 = vadd.f32 %v841, %v1009
        %v1011 = vpop.f32.mrb[0].mxu0
        %1012 = vmatprep.mubr.bf16.mxu0 0
        %1013 = vmatmul.mubr.bf16.gmra.mrb[0].mxu0 %v875
        %v1014 = vpop.f32.mrb[0].mxu0
        %v1015 = vadd.f32 %v841, %v1014
        %v1016 = vpop.f32.mrb[0].mxu0
        %v1017 = vpop.f32.mrb[0].mxu0
        %v1018 = vadd.f32 %v841, %v1017
        %v1019 = vpop.f32.mrb[0].mxu0
        %1020 = vmatprep.mubr.bf16.mxu0 0
        %1021 = vmatmul.mubr.bf16.gmra.mrb[0].mxu0 %v878
        %v1022 = vpop.f32.mrb[0].mxu0
        %v1023 = vadd.f32 %v841, %v1022
        %v1024 = vpop.f32.mrb[0].mxu0
        %v1025 = vpop.f32.mrb[0].mxu0
        %v1026 = vadd.f32 %v841, %v1025
        %v1027 = vpop.f32.mrb[0].mxu0
        %1028 = vmatprep.mubr.bf16.mxu0 0
        %1029 = vmatmul.mubr.bf16.gmra.mrb[0].mxu0 %v881
        %v1030 = vpop.f32.mrb[0].mxu0
        %v1031 = vadd.f32 %v841, %v1030
        %v1032 = vpop.f32.mrb[0].mxu0
        %v1033 = vpop.f32.mrb[0].mxu0
        %v1034 = vadd.f32 %v841, %v1033
        %v1035 = vpop.f32.mrb[0].mxu0
        %1036 = vmatprep.mubr.bf16.mxu0 0
        %1037 = vmatmul.mubr.bf16.gmra.mrb[0].mxu0 %v884
        %v1038 = vpop.f32.mrb[0].mxu0
        %v1039 = vadd.f32 %v841, %v1038
        %v1040 = vpop.f32.mrb[0].mxu0
        %v1041 = vpop.f32.mrb[0].mxu0
        %v1042 = vadd.f32 %v841, %v1041
        %v1043 = vpop.f32.mrb[0].mxu0
        %1044 = vmatprep.mubr.bf16.mxu0 0
        %1045 = vmatmul.mubr.bf16.gmra.mrb[0].mxu0 %v887
        %v1046 = vpop.f32.mrb[0].mxu0
        %v1047 = vadd.f32 %v841, %v1046
        %v1048 = vpop.f32.mrb[0].mxu0
        %v1049 = vpop.f32.mrb[0].mxu0
        %v1050 = vadd.f32 %v841, %v1049
        %v1051 = vpop.f32.mrb[0].mxu0
        %1052 = vmatprep.mubr.bf16.mxu0 0
        %1053 = vmatmul.mubr.bf16.gmra.mrb[0].mxu0 %v890
        %v1054 = vpop.f32.mrb[0].mxu0
        %v1055 = vadd.f32 %v841, %v1054
        %v1056 = vpop.f32.mrb[0].mxu0
        %v1057 = vpop.f32.mrb[0].mxu0
        %v1058 = vadd.f32 %v841, %v1057
        %v1059 = vpop.f32.mrb[0].mxu0
        %1060 = vmatprep.mubr.bf16.mxu0 0
        %1061 = vmatmul.mubr.bf16.gmra.mrb[0].mxu0 %v893
        %v1062 = vpop.f32.mrb[0].mxu0
        %v1063 = vadd.f32 %v841, %v1062
        %v1064 = vpop.f32.mrb[0].mxu0
        %v1065 = vpop.f32.mrb[0].mxu0
        %v1066 = vadd.f32 %v841, %v1065
        %v1067 = vpop.f32.mrb[0].mxu0
        %1068 = vmatprep.mubr.bf16.mxu0 0
        %1069 = vmatmul.mubr.bf16.gmra.mrb[0].mxu0 %v896
        %v1070 = vpop.f32.mrb[0].mxu0
        %v1071 = vadd.f32 %v841, %v1070
        %v1072 = vpop.f32.mrb[0].mxu0
        %v1073 = vpop.f32.mrb[0].mxu0
        %v1074 = vadd.f32 %v841, %v1073
        %v1075 = vpop.f32.mrb[0].mxu0
        %1076 = vmatprep.mubr.bf16.mxu0 0
        %1077 = vmatmul.mubr.bf16.gmra.mrb[0].mxu0 %v899
        %v1078 = vpop.f32.mrb[0].mxu0
        %v1079 = vadd.f32 %v841, %v1078
        %v1080 = vpop.f32.mrb[0].mxu0
        %v1081 = vpop.f32.mrb[0].mxu0
        %v1082 = vadd.f32 %v841, %v1081
        %v1083 = vpop.f32.mrb[0].mxu0
        %1084 = vmatprep.mubr.bf16.mxu0 0
        %1085 = vmatmul.mubr.bf16.gmra.mrb[0].mxu0 %v902
        %v1086 = vpop.f32.mrb[0].mxu0
        %v1087 = vadd.f32 %v841, %v1086
        %v1088 = vpop.f32.mrb[0].mxu0
        %v1089 = vpop.f32.mrb[0].mxu0
        %v1090 = vadd.f32 %v841, %v1089
        %v1091 = vpop.f32.mrb[0].mxu0
        %1092 = vmatprep.mubr.bf16.mxu0 0
        %1093 = vmatmul.mubr.bf16.gmra.mrb[0].mxu0 %v905
        %v1094 = vpop.f32.mrb[0].mxu0
        %v1095 = vadd.f32 %v841, %v1094
        %v1096 = vpop.f32.mrb[0].mxu0
        %v1097 = vpop.f32.mrb[0].mxu0
        %v1098 = vadd.f32 %v841, %v1097
        %v1099 = vpop.f32.mrb[0].mxu0
        %1100 = vmatprep.mubr.bf16.mxu0 0
        %1101 = vmatmul.mubr.bf16.gmra.mrb[0].mxu0 %v908
        %v1102 = vpop.f32.mrb[0].mxu0
        %v1103 = vadd.f32 %v841, %v1102
        %v1104 = vpop.f32.mrb[0].mxu0
        %v1105 = vpop.f32.mrb[0].mxu0
        %v1106 = vadd.f32 %v841, %v1105
        %v1107 = vpop.f32.mrb[0].mxu0
        %1108 = vmatprep.mubr.bf16.mxu0 0
        %1109 = vmatmul.mubr.bf16.gmra.mrb[0].mxu0 %v911
        %v1110 = vpop.f32.mrb[0].mxu0
        %v1111 = vadd.f32 %v841, %v1110
        %v1112 = vpop.f32.mrb[0].mxu0
        %v1113 = vpop.f32.mrb[0].mxu0
        %v1114 = vadd.f32 %v841, %v1113
        %v1115 = vpop.f32.mrb[0].mxu0
        %1116 = vmatprep.mubr.bf16.mxu0 0
        %1117 = vmatmul.mubr.bf16.gmra.mrb[0].mxu0 %v914
        %v1118 = vpop.f32.mrb[0].mxu0
        %v1119 = vadd.f32 %v841, %v1118
        %v1120 = vpop.f32.mrb[0].mxu0
        %v1121 = vpop.f32.mrb[0].mxu0
        %v1122 = vadd.f32 %v841, %v1121
        %v1123 = vpop.f32.mrb[0].mxu0
        %1124 = vmatprep.mubr.bf16.mxu0 0
        %1125 = vmatmul.mubr.bf16.gmra.mrb[0].mxu0 %v917
        %v1126 = vpop.f32.mrb[0].mxu0
        %v1127 = vadd.f32 %v841, %v1126
        %v1128 = vpop.f32.mrb[0].mxu0
        %v1129 = vpop.f32.mrb[0].mxu0
        %v1130 = vadd.f32 %v841, %v1129
        %v1131 = vpop.f32.mrb[0].mxu0
        %1132 = vmatprep.mubr.bf16.mxu0 0
        %1133 = vmatmul.mubr.bf16.gmra.mrb[0].mxu0 %v920
        %v1134 = vpop.f32.mrb[0].mxu0
        %v1135 = vadd.f32 %v841, %v1134
        %v1136 = vpop.f32.mrb[0].mxu0
        %v1137 = vpop.f32.mrb[0].mxu0
        %v1138 = vadd.f32 %v841, %v1137
        %v1139 = vpop.f32.mrb[0].mxu0
        %1140 = vmatprep.mubr.bf16.mxu0 0
        %1141 = vmatmul.mubr.bf16.gmra.mrb[0].mxu0 %v923
        %v1142 = vpop.f32.mrb[0].mxu0
        %v1143 = vadd.f32 %v841, %v1142
        %v1144 = vpop.f32.mrb[0].mxu0
        %v1145 = vpop.f32.mrb[0].mxu0
        %v1146 = vadd.f32 %v841, %v1145
        %v1147 = vpop.f32.mrb[0].mxu0
        %1148 = vmatprep.mubr.bf16.mxu0 0
        %1149 = vmatmul.mubr.bf16.gmra.mrb[0].mxu0 %v926
        %v1150 = vpop.f32.mrb[0].mxu0
        %v1151 = vadd.f32 %v841, %v1150
        %v1152 = vpop.f32.mrb[0].mxu0
        %v1153 = vpop.f32.mrb[0].mxu0
        %v1154 = vadd.f32 %v841, %v1153
        %v1155 = vpop.f32.mrb[0].mxu0
        %1156 = vmatprep.mubr.bf16.mxu0 0
        %1157 = vmatmul.mubr.bf16.gmra.mrb[0].mxu0 %v929
        %v1158 = vpop.f32.mrb[0].mxu0
        %v1159 = vadd.f32 %v841, %v1158
        %v1160 = vpop.f32.mrb[0].mxu0
        %v1161 = vpop.f32.mrb[0].mxu0
        %v1162 = vadd.f32 %v841, %v1161
        %v1163 = vpop.f32.mrb[0].mxu0
        %1164 = vmatprep.mubr.bf16.mxu0 0
        %1165 = vmatmul.mubr.bf16.gmra.mrb[0].mxu0 %v932
        %v1166 = vpop.f32.mrb[0].mxu0
        %v1167 = vadd.f32 %v841, %v1166
        %v1168 = vpop.f32.mrb[0].mxu0
        %v1169 = vpop.f32.mrb[0].mxu0
        %v1170 = vadd.f32 %v841, %v1169
        %v1171 = vpop.f32.mrb[0].mxu0
        %1172 = vmatprep.mubr.bf16.mxu0 0
        %1173 = vmatmul.mubr.bf16.gmra.mrb[0].mxu0 %v935
        %v1174 = vpop.f32.mrb[0].mxu0
        %v1175 = vadd.f32 %v841, %v1174
        %v1176 = vpop.f32.mrb[0].mxu0
        %v1177 = vpop.f32.mrb[0].mxu0
        %v1178 = vadd.f32 %v841, %v1177
        %v1179 = vpop.f32.mrb[0].mxu0
        %1180 = vmatprep.mubr.bf16.mxu0 0
        %1181 = vmatmul.mubr.bf16.gmra.mrb[0].mxu0 %v938
        %v1182 = vpop.f32.mrb[0].mxu0
        %v1183 = vadd.f32 %v841, %v1182
        %v1184 = vpop.f32.mrb[0].mxu0
        %v1185 = vpop.f32.mrb[0].mxu0
        %v1186 = vadd.f32 %v841, %v1185
        %v1187 = vpop.f32.mrb[0].mxu0
        %1188 = vmatprep.mubr.bf16.mxu0 0
        %1189 = vmatmul.mubr.bf16.gmra.mrb[0].mxu0 %v941
        %v1190 = vpop.f32.mrb[0].mxu0
        %v1191 = vadd.f32 %v841, %v1190
        %v1192 = vpop.f32.mrb[0].mxu0
        %v1193 = vpop.f32.mrb[0].mxu0
        %v1194 = vadd.f32 %v841, %v1193
        %v1195 = vpop.f32.mrb[0].mxu0
        %1196 = vmatprep.mubr.bf16.mxu0 0
        %1197 = vmatmul.mubr.bf16.gmra.mrb[0].mxu0 %v944
        %v1198 = vpop.f32.mrb[0].mxu0
        %v1199 = vadd.f32 %v841, %v1198
        %v1200 = vpop.f32.mrb[0].mxu0
        %v1201 = vpop.f32.mrb[0].mxu0
        %v1202 = vadd.f32 %v841, %v1201
        %v1203 = vpop.f32.mrb[0].mxu0
        %1204 = vmatprep.mubr.bf16.mxu0 0
        %1205 = vmatmul.mubr.bf16.gmra.mrb[0].mxu0 %v947
        %v1206 = vpop.f32.mrb[0].mxu0
        %v1207 = vadd.f32 %v841, %v1206
        %v1208 = vpop.f32.mrb[0].mxu0
        %v1209 = vpop.f32.mrb[0].mxu0
        %v1210 = vadd.f32 %v841, %v1209
        %v1211 = vpop.f32.mrb[0].mxu0
        %1212 = vmatprep.mubr.bf16.mxu0 0
        %1213 = vmatmul.mubr.bf16.gmra.mrb[0].mxu0 %v950
        %v1214 = vpop.f32.mrb[0].mxu0
        %v1215 = vadd.f32 %v841, %v1214
        %v1216 = vpop.f32.mrb[0].mxu0
        %v1217 = vpop.f32.mrb[0].mxu0
        %v1218 = vadd.f32 %v841, %v1217
        %v1219 = vpop.f32.mrb[0].mxu0
        %1220 = vmatprep.mubr.bf16.mxu0 0
        %1221 = vmatmul.mubr.bf16.gmra.mrb[0].mxu0 %v953
        %v1222 = vpop.f32.mrb[0].mxu0
        %v1223 = vadd.f32 %v841, %v1222
        %v1224 = vpop.f32.mrb[0].mxu0
        %v1225 = vpop.f32.mrb[0].mxu0
        %v1226 = vadd.f32 %v841, %v1225
        %v1227 = vpop.f32.mrb[0].mxu0
        %1228 = vmatprep.mubr.bf16.mxu0 0
        %1229 = vmatmul.mubr.bf16.gmra.mrb[0].mxu0 %v956
        %v1230 = vpop.f32.mrb[0].mxu0
        %v1231 = vadd.f32 %v841, %v1230
        %v1232 = vpop.f32.mrb[0].mxu0
        %v1233 = vpop.f32.mrb[0].mxu0
        %v1234 = vadd.f32 %v841, %v1233
        %v1235 = vpop.f32.mrb[0].mxu0
        %1236 = vmatprep.mubr.bf16.mxu0 0
        %1237 = vmatmul.mubr.bf16.gmra.mrb[0].mxu0 %v959
        %v1238 = vpop.f32.mrb[0].mxu0
        %v1239 = vadd.f32 %v841, %v1238
        %v1240 = vpop.f32.mrb[0].mxu0
        %v1241 = vpop.f32.mrb[0].mxu0
        %v1242 = vadd.f32 %v841, %v1241
        %v1243 = vpop.f32.mrb[0].mxu0
        %1244 = vmatprep.mubr.bf16.mxu0 0
        %1245 = vmatmul.mubr.bf16.gmra.mrb[0].mxu0 %v962
        %v1246 = vpop.f32.mrb[0].mxu0
        %v1247 = vadd.f32 %v841, %v1246
        %v1248 = vpop.f32.mrb[0].mxu0
        %v1249 = vpop.f32.mrb[0].mxu0
        %v1250 = vadd.f32 %v841, %v1249
        %v1251 = vpop.f32.mrb[0].mxu0
        %1252 = vdwg.mxu0
        %v1253 = vmax.f32 %v999, 0.0
        %v1254 = vmax.f32 %v1002, 0.0
        %v1255 = vmax.f32 %v1007, 0.0
        %v1256 = vmax.f32 %v1010, 0.0
        %v1257 = vmax.f32 %v1015, 0.0
        %v1258 = vmax.f32 %v1018, 0.0
        %v1259 = vmax.f32 %v1023, 0.0
        %v1260 = vmax.f32 %v1026, 0.0
        %v1261 = vmax.f32 %v1031, 0.0
        %v1262 = vmax.f32 %v1034, 0.0
        %v1263 = vmax.f32 %v1039, 0.0
        %v1264 = vmax.f32 %v1042, 0.0
        %v1265 = vmax.f32 %v1047, 0.0
        %v1266 = vmax.f32 %v1050, 0.0
        %v1267 = vmax.f32 %v1055, 0.0
        %v1268 = vmax.f32 %v1058, 0.0
        %v1269 = vmax.f32 %v1063, 0.0
        %v1270 = vmax.f32 %v1066, 0.0
        %v1271 = vmax.f32 %v1071, 0.0
        %v1272 = vmax.f32 %v1074, 0.0
        %v1273 = vmax.f32 %v1079, 0.0
        %v1274 = vmax.f32 %v1082, 0.0
        %v1275 = vmax.f32 %v1087, 0.0
        %v1276 = vmax.f32 %v1090, 0.0
        %v1277 = vmax.f32 %v1095, 0.0
        %v1278 = vmax.f32 %v1098, 0.0
        %v1279 = vmax.f32 %v1103, 0.0
        %v1280 = vmax.f32 %v1106, 0.0
        %v1281 = vmax.f32 %v1111, 0.0
        %v1282 = vmax.f32 %v1114, 0.0
        %v1283 = vmax.f32 %v1119, 0.0
        %v1284 = vmax.f32 %v1122, 0.0
        %v1285 = vmax.f32 %v1127, 0.0
        %v1286 = vmax.f32 %v1130, 0.0
        %v1287 = vmax.f32 %v1135, 0.0
        %v1288 = vmax.f32 %v1138, 0.0
        %v1289 = vmax.f32 %v1143, 0.0
        %v1290 = vmax.f32 %v1146, 0.0
        %v1291 = vmax.f32 %v1151, 0.0
        %v1292 = vmax.f32 %v1154, 0.0
        %v1293 = vmax.f32 %v1159, 0.0
        %v1294 = vmax.f32 %v1162, 0.0
        %v1295 = vmax.f32 %v1167, 0.0
        %v1296 = vmax.f32 %v1170, 0.0
        %v1297 = vmax.f32 %v1175, 0.0
        %v1298 = vmax.f32 %v1178, 0.0
        %v1299 = vmax.f32 %v1183, 0.0
        %v1300 = vmax.f32 %v1186, 0.0
        %v1301 = vmax.f32 %v1191, 0.0
        %v1302 = vmax.f32 %v1194, 0.0
        %v1303 = vmax.f32 %v1199, 0.0
        %v1304 = vmax.f32 %v1202, 0.0
        %v1305 = vmax.f32 %v1207, 0.0
        %v1306 = vmax.f32 %v1210, 0.0
        %v1307 = vmax.f32 %v1215, 0.0
        %v1308 = vmax.f32 %v1218, 0.0
        %v1309 = vmax.f32 %v1223, 0.0
        %v1310 = vmax.f32 %v1226, 0.0
        %v1311 = vmax.f32 %v1231, 0.0
        %v1312 = vmax.f32 %v1234, 0.0
        %v1313 = vmax.f32 %v1239, 0.0
        %v1314 = vmax.f32 %v1242, 0.0
        %v1315 = vmax.f32 %v1247, 0.0
        %v1316 = vmax.f32 %v1250, 0.0
        %1317 = vst [vmem:[%s218] sm:$0xff] %v1253
        %1318 = vst [vmem:[%s218 + $0x8] sm:$0xff] %v1254
        %1319 = vst [vmem:[%s218 + $0x10] sm:$0xff] %v1255
        %1320 = vst [vmem:[%s218 + $0x18] sm:$0xff] %v1256
        %1321 = vst [vmem:[%s218 + $0x20] sm:$0xff] %v1257
        %1322 = vst [vmem:[%s218 + $0x28] sm:$0xff] %v1258
        %1323 = vst [vmem:[%s218 + $0x30] sm:$0xff] %v1259
        %1324 = vst [vmem:[%s218 + $0x38] sm:$0xff] %v1260
        %1325 = vst [vmem:[%s218 + $0x40] sm:$0xff] %v1261
        %1326 = vst [vmem:[%s218 + $0x48] sm:$0xff] %v1262
        %1327 = vst [vmem:[%s218 + $0x50] sm:$0xff] %v1263
        %1328 = vst [vmem:[%s218 + $0x58] sm:$0xff] %v1264
        %1329 = vst [vmem:[%s218 + $0x60] sm:$0xff] %v1265
        %1330 = vst [vmem:[%s218 + $0x68] sm:$0xff] %v1266
        %1331 = vst [vmem:[%s218 + $0x70] sm:$0xff] %v1267
        %1332 = vst [vmem:[%s218 + $0x78] sm:$0xff] %v1268
        %1333 = vst [vmem:[%s218 + $0x80] sm:$0xff] %v1269
        %1334 = vst [vmem:[%s218 + $0x88] sm:$0xff] %v1270
        %1335 = vst [vmem:[%s218 + $0x90] sm:$0xff] %v1271
        %1336 = vst [vmem:[%s218 + $0x98] sm:$0xff] %v1272
        %1337 = vst [vmem:[%s218 + $0xa0] sm:$0xff] %v1273
        %1338 = vst [vmem:[%s218 + $0xa8] sm:$0xff] %v1274
        %1339 = vst [vmem:[%s218 + $0xb0] sm:$0xff] %v1275
        %1340 = vst [vmem:[%s218 + $0xb8] sm:$0xff] %v1276
        %1341 = vst [vmem:[%s218 + $0xc0] sm:$0xff] %v1277
        %1342 = vst [vmem:[%s218 + $0xc8] sm:$0xff] %v1278
        %1343 = vst [vmem:[%s218 + $0xd0] sm:$0xff] %v1279
        %1344 = vst [vmem:[%s218 + $0xd8] sm:$0xff] %v1280
        %1345 = vst [vmem:[%s218 + $0xe0] sm:$0xff] %v1281
        %1346 = vst [vmem:[%s218 + $0xe8] sm:$0xff] %v1282
        %1347 = vst [vmem:[%s218 + $0xf0] sm:$0xff] %v1283
        %1348 = vst [vmem:[%s218 + $0xf8] sm:$0xff] %v1284
        %1349 = vst [vmem:[%s218 + $0x100] sm:$0xff] %v1285
        %1350 = vst [vmem:[%s218 + $0x108] sm:$0xff] %v1286
        %1351 = vst [vmem:[%s218 + $0x110] sm:$0xff] %v1287
        %1352 = vst [vmem:[%s218 + $0x118] sm:$0xff] %v1288
        %1353 = vst [vmem:[%s218 + $0x120] sm:$0xff] %v1289
        %1354 = vst [vmem:[%s218 + $0x128] sm:$0xff] %v1290
        %1355 = vst [vmem:[%s218 + $0x130] sm:$0xff] %v1291
        %1356 = vst [vmem:[%s218 + $0x138] sm:$0xff] %v1292
        %1357 = vst [vmem:[%s218 + $0x140] sm:$0xff] %v1293
        %1358 = vst [vmem:[%s218 + $0x148] sm:$0xff] %v1294
        %1359 = vst [vmem:[%s218 + $0x150] sm:$0xff] %v1295
        %1360 = vst [vmem:[%s218 + $0x158] sm:$0xff] %v1296
        %1361 = vst [vmem:[%s218 + $0x160] sm:$0xff] %v1297
        %1362 = vst [vmem:[%s218 + $0x168] sm:$0xff] %v1298
        %1363 = vst [vmem:[%s218 + $0x170] sm:$0xff] %v1299
        %1364 = vst [vmem:[%s218 + $0x178] sm:$0xff] %v1300
        %1365 = vst [vmem:[%s218 + $0x180] sm:$0xff] %v1301
        %1366 = vst [vmem:[%s218 + $0x188] sm:$0xff] %v1302
        %1367 = vst [vmem:[%s218 + $0x190] sm:$0xff] %v1303
        %1368 = vst [vmem:[%s218 + $0x198] sm:$0xff] %v1304
        %1369 = vst [vmem:[%s218 + $0x1a0] sm:$0xff] %v1305
        %1370 = vst [vmem:[%s218 + $0x1a8] sm:$0xff] %v1306
        %1371 = vst [vmem:[%s218 + $0x1b0] sm:$0xff] %v1307
        %1372 = vst [vmem:[%s218 + $0x1b8] sm:$0xff] %v1308
        %1373 = vst [vmem:[%s218 + $0x1c0] sm:$0xff] %v1309
        %1374 = vst [vmem:[%s218 + $0x1c8] sm:$0xff] %v1310
        %1375 = vst [vmem:[%s218 + $0x1d0] sm:$0xff] %v1311
        %1376 = vst [vmem:[%s218 + $0x1d8] sm:$0xff] %v1312
        %1377 = vst [vmem:[%s218 + $0x1e0] sm:$0xff] %v1313
        %1378 = vst [vmem:[%s218 + $0x1e8] sm:$0xff] %v1314
        %1379 = vst [vmem:[%s218 + $0x1f0] sm:$0xff] %v1315
        %1380 = vst [vmem:[%s218 + $0x1f8] sm:$0xff] %v1316
        %s1381 = sand.u32 %s137, 1
        %s1382 = scalar_lea.sflag [#allocation3], %s1381
        %s1383 = sand.u32 %s137, 1
        %s1384 = smul.addr %s1383, 512
        %s1385 = scalar_lea.vmem [#allocation2], %s1384
        // Predicated region
        $region41: #{tpu_custom_call.1} parent=39 // pred_check
          %p1386 = pneg %p147
        $region42: #{tpu_custom_call.1} parent=39 // pred_check_branch
          %1388 = sbr.rel (%p1386) target = $region44
        $region43: #{tpu_custom_call.1} parent=39 // pred_region
          %s1389 = smul.u32 64, %s19
          %s1391 = ssub.s32 8192, 8192
          %1392 = vsyncadd %s1382, %s1391
          %s1393 = smul.addr %s1389, 128
          %s1394 = scalar_lea.hbm %s5, %s1393
          %s1395 = sshll.u32 %s1385, 4
          %s1396 = int_to_ptr.vmem [resolvable:$true] %s1395
          %1401 = dma.vmem_to_hbm [thread:$0]  %s1396, 8192, %s1394, %s1382, 128, 128, 8
        $region44: #{tpu_custom_call.1} parent=39 // pred_fallthru
          _
      $region40: #{tpu_custom_call.1} parent=5 // pred_fallthru
        _
      %p1402 = scmp.le.s32.totalorder 2, %s14
      // Predicated region
      $region45: #{tpu_custom_call.1} parent=5 // pred_check
        %p1403 = pneg %p1402
      $region46: #{tpu_custom_call.1} parent=5 // pred_check_branch
        %1405 = sbr.rel (%p1403) target = $region48
      $region47: #{tpu_custom_call.1} parent=5 // pred_region
        %s1406 = ssub.s32 %s14, 2
        // Predicated region
        $region49: #{tpu_custom_call.1} parent=47 // pred_check
          %p1407 = pneg %p153
        $region50: #{tpu_custom_call.1} parent=47 // pred_check_branch
          %1409 = sbr.rel (%p1407) target = $region52
        $region51: #{tpu_custom_call.1} parent=47 // pred_region
          %s1410 = sand.u32 %s138, 1
          %s1411 = scalar_lea.sflag [#allocation3], %s1410
          %s1412 = sand.u32 %s138, 1
          %s1413 = smul.addr %s1412, 512
          %s1414 = scalar_lea.vmem [#allocation2], %s1413
          %1415 = dma.done %s1411, 8192
        $region52: #{tpu_custom_call.1} parent=47 // pred_fallthru
          _
      $region48: #{tpu_custom_call.1} parent=5 // pred_fallthru
        _
    $region6: #{tpu_custom_call.1} parent=1 // loop_footer
      %s18 = sadd.s32 1, %s14
    $region7: #{tpu_custom_call.1} parent=1 // loop_footer_branch
      %13 = sbr.rel target = $region3
    $region8: #{tpu_custom_call.1} parent=1 // loop_exit
      _
    %1416 = vsyncpa [#allocation3], 1
    %s1417 = scalar_lea.sflag [#allocation3], 1
    %1418 = vsyncpa %s1417, 1

</llo_original>
